<compile_context>
chip_gen: v6e
topology: v6e:2x2x1
jax: 0.10.0
libtpu: 0.0.40
codegen_flags: <defaults>
</compile_context>

<pallas_src>
import jax
import jax.numpy as jnp
from jax import lax
from jax.experimental import pallas as pl
from jax.experimental.pallas import tpu as pltpu

_LANE = 128


def _relu_conv1x1_sigmoid_kernel(x_ref, w_ref, b_ref, o_ref):
    # x_ref: (N, C_in)          activations
    # w_ref: (C_out_pad, C_in)  conv weight, untransposed (PyTorch layout)
    # b_ref: (1, C_out_pad)     bias (zero-padded)
    # o_ref: (N, C_out_pad)     lane-dense output
    x = jnp.maximum(x_ref[...], 0.0)                         # ReLU
    # 1x1 conv == x @ W^T, expressed as dot_general with contracting dim 1 on
    # both operands so no transpose of W is ever materialized.
    y = lax.dot_general(
        x, w_ref[...],
        dimension_numbers=(((1,), (1,)), ((), ())),
        preferred_element_type=jnp.float32,
    )
    y = y + b_ref[...]                                       # bias
    o_ref[...] = jax.nn.sigmoid(y)                           # Sigmoid (EUP exp path)


def relu_conv2d_sigmoid(x_nchw, weight, bias):
    """x_nchw: (N, C_in, 1, 1) f32
       weight: (C_out, C_in, 1, 1) f32  (PyTorch Conv2d layout)
       bias:   (C_out,) f32
       returns (N, C_out, 1, 1) f32 — matches ReLU -> Conv2d(1x1) -> Sigmoid."""
    N, C_in, H, W = x_nchw.shape
    assert H == 1 and W == 1, "module only uses 1x1 spatial"
    C_out = weight.shape[0]
    C_out_pad = ((C_out + _LANE - 1) // _LANE) * _LANE       # 336 -> 384

    x2d = x_nchw.reshape(N, C_in)
    # Parameter prep (amortizable / constant-foldable under jit): keep the
    # PyTorch (C_out, C_in) layout, just zero-pad the C_out rows to 128-align
    # the output lanes.
    w2d = jnp.pad(weight.reshape(C_out, C_in), ((0, C_out_pad - C_out), (0, 0)))
    b2d = jnp.pad(bias, (0, C_out_pad - C_out)).reshape(1, C_out_pad)

    out = pl.pallas_call(
        _relu_conv1x1_sigmoid_kernel,
        out_shape=jax.ShapeDtypeStruct((N, C_out_pad), jnp.float32),
        in_specs=[
            pl.BlockSpec((N, C_in), lambda: (0, 0),
                         memory_space=pltpu.MemorySpace.VMEM),
            pl.BlockSpec((C_out_pad, C_in), lambda: (0, 0),
                         memory_space=pltpu.MemorySpace.VMEM),
            pl.BlockSpec((1, C_out_pad), lambda: (0, 0),
                         memory_space=pltpu.MemorySpace.VMEM),
        ],
        out_specs=pl.BlockSpec((N, C_out_pad), lambda: (0, 0),
                               memory_space=pltpu.MemorySpace.VMEM),
    )(x2d, w2d, b2d)

    return out[:, :C_out].reshape(N, C_out, 1, 1)


if __name__ == "__main__":
    key = jax.random.PRNGKey(0)
    kx, kw, kb = jax.random.split(key, 3)

    # Shapes from the module: x (1, 84, 1, 1), Conv2d(84, 336, kernel=1) + bias.
    N, C_in, C_out = 1, 84, 336
    x = jax.random.normal(kx, (N, C_in, 1, 1), dtype=jnp.float32)
    # Deterministic synthetic parameters (uniform like PyTorch's default init).
    fan_in = C_in  # 1x1 kernel
    bound = 1.0 / (fan_in ** 0.5)
    weight = jax.random.uniform(kw, (C_out, C_in, 1, 1), jnp.float32, -bound, bound)
    bias = jax.random.uniform(kb, (C_out,), jnp.float32, -bound, bound)

    out = relu_conv2d_sigmoid(x, weight, bias)
    jax.block_until_ready(out)

    # Plain-JAX reference (same math as the PyTorch module).
    ref = jax.nn.sigmoid(
        jnp.maximum(x.reshape(N, C_in), 0.0) @ weight.reshape(C_out, C_in).T + bias
    ).reshape(N, C_out, 1, 1)
    assert out.shape == (N, C_out, 1, 1)
    assert jnp.allclose(out, ref, atol=1e-5, rtol=1e-5)

    print("KERNEL_OK")
</pallas_src>

<mosaic_0001>
module attributes {stable_mosaic.version = 11 : i64} {
  func.func @_relu_conv1x1_sigmoid_kernel(%arg0: memref<1x84xf32, #tpu.memory_space<vmem>>, %arg1: memref<384x84xf32, #tpu.memory_space<vmem>>, %arg2: memref<1x384xf32, #tpu.memory_space<vmem>>, %arg3: memref<1x384xf32, #tpu.memory_space<vmem>>) attributes {dimension_semantics = [], scalar_prefetch = 0 : i64, scratch_operands = 0 : i64, tpu.core_type = #tpu.core_type<tc>} {
    %c0 = arith.constant 0 : index
    %c0_0 = arith.constant 0 : index
    %0 = vector.load %arg0[%c0, %c0_0] : memref<1x84xf32, #tpu.memory_space<vmem>>, vector<1x84xf32>
    %cst = arith.constant 0.000000e+00 : f32
    %1 = vector.broadcast %cst : f32 to vector<1x84xf32>
    %2 = arith.maximumf %0, %1 : vector<1x84xf32>
    %c0_1 = arith.constant 0 : index
    %c0_2 = arith.constant 0 : index
    %3 = vector.load %arg1[%c0_1, %c0_2] : memref<384x84xf32, #tpu.memory_space<vmem>>, vector<384x84xf32>
    %cst_3 = arith.constant dense<0.000000e+00> : vector<1x384xf32>
    %4 = tpu.matmul %2, %3, %cst_3 {dimension_numbers = #tpu.dot_dimension_numbers<[1], [1], [0], [0], [0, 0, 1, 0], [], []>} : vector<1x84xf32>, vector<384x84xf32>, vector<1x384xf32> -> vector<1x384xf32>
    %c0_4 = arith.constant 0 : index
    %c0_5 = arith.constant 0 : index
    %5 = vector.load %arg2[%c0_4, %c0_5] : memref<1x384xf32, #tpu.memory_space<vmem>>, vector<1x384xf32>
    %6 = arith.addf %4, %5 : vector<1x384xf32>
    %7 = arith.negf %6 : vector<1x384xf32>
    %8 = math.exp %7 : vector<1x384xf32>
    %cst_6 = arith.constant 1.000000e+00 : f32
    %9 = vector.broadcast %cst_6 : f32 to vector<1x384xf32>
    %10 = arith.addf %9, %8 : vector<1x384xf32>
    %11 = arith.divf %9, %10 : vector<1x384xf32>
    %c0_7 = arith.constant 0 : index
    %c0_8 = arith.constant 0 : index
    %12 = vector.load %arg3[%c0_7, %c0_8] : memref<1x384xf32, #tpu.memory_space<vmem>>, vector<1x384xf32>
    tpu.vector_store %arg3[%c0_7, %c0_8], %11 {strides = array<i32>} : memref<1x384xf32, #tpu.memory_space<vmem>>, vector<1x384xf32>,
    return
  }
}

</mosaic_0001>

<llo_original>
// kernel: tpu_custom_call.1
$region0: #{tpu_custom_call.1}
  #allocation0 [shape = 'u32[]', space=smem, size = 0x4, offset = 0x4, fixed_abs, tag = 'smem constant byte address 0x4 - core index']
  #allocation1 [shape = 'u32[144,128]{1,0:T(1,128)}', space=vmem, size = 0x12000, scoped, tag = 'internal scratch']
  %s0 = inlined_call_operand.vmem [shape: f32[1,84], index: 0, kind: input, shape index: {}]
  %s1 = inlined_call_operand.vmem [shape: f32[384,84], index: 1, kind: input, shape index: {}]
  %s2 = inlined_call_operand.vmem [shape: f32[1,384], index: 2, kind: input, shape index: {}]
  %s3 = inlined_call_operand.hbm [shape: f32[1,384], index: 3, kind: output, shape index: {}]
  %s4 = sld [smem:[#allocation0]]
  $region22: #{tpu_custom_call.1} parent=0
    _
  %s6 = ssub.s32 1, %s4
  %s7 = scalar_select 0, %s6, %s4
  $region1: #{tpu_custom_call.1} parent=0
    #allocation2 [shape = 'u8[1536]{0}', space=vmem, size = 0x800, scoped, tag = 'output window, operand 0, single buffered']
    #allocation3 [shape = 's32[1]{0}', space=sflag, size = 0x4, scoped, tag = 'scoped memory for tpu_custom_call.1']
    %8 = vsyncpa [#allocation3], 0
    // Predicated region
    $region2: #{tpu_custom_call.1} parent=1 // pred_check
      _
    $region3: #{tpu_custom_call.1} parent=1 // pred_check_branch
      %10 = sbr.rel (0) target = $region5
    $region4: #{tpu_custom_call.1} parent=1 // pred_region
      _
    $region5: #{tpu_custom_call.1} parent=1 // pred_fallthru
      _
    // Predicated region
    $region6: #{tpu_custom_call.1} parent=1 // pred_check
      _
    $region7: #{tpu_custom_call.1} parent=1 // pred_check_branch
      %12 = sbr.rel (0) target = $region9
    $region8: #{tpu_custom_call.1} parent=1 // pred_region
      _
    $region9: #{tpu_custom_call.1} parent=1 // pred_fallthru
      _
    // Predicated region
    $region10: #{tpu_custom_call.1} parent=1 // pred_check
      _
    $region11: #{tpu_custom_call.1} parent=1 // pred_check_branch
      %14 = sbr.rel (0) target = $region13
    $region12: #{tpu_custom_call.1} parent=1 // pred_region
      _
    $region13: #{tpu_custom_call.1} parent=1 // pred_fallthru
      _
    %v15 = vld [vmem:[%s0] sm:$0x1]
    %v16 = vmax.f32 %v15, 0.0
    %v17 = vld [vmem:[%s1] sm:$0xff]
    %v18 = vld [vmem:[%s1 + $0x8] sm:$0xff]
    %v19 = vld [vmem:[%s1 + $0x10] sm:$0xff]
    %v20 = vld [vmem:[%s1 + $0x18] sm:$0xff]
    %v21 = vld [vmem:[%s1 + $0x20] sm:$0xff]
    %v22 = vld [vmem:[%s1 + $0x28] sm:$0xff]
    %v23 = vld [vmem:[%s1 + $0x30] sm:$0xff]
    %v24 = vld [vmem:[%s1 + $0x38] sm:$0xff]
    %v25 = vld [vmem:[%s1 + $0x40] sm:$0xff]
    %v26 = vld [vmem:[%s1 + $0x48] sm:$0xff]
    %v27 = vld [vmem:[%s1 + $0x50] sm:$0xff]
    %v28 = vld [vmem:[%s1 + $0x58] sm:$0xff]
    %v29 = vld [vmem:[%s1 + $0x60] sm:$0xff]
    %v30 = vld [vmem:[%s1 + $0x68] sm:$0xff]
    %v31 = vld [vmem:[%s1 + $0x70] sm:$0xff]
    %v32 = vld [vmem:[%s1 + $0x78] sm:$0xff]
    %v33 = vld [vmem:[%s1 + $0x80] sm:$0xff]
    %v34 = vld [vmem:[%s1 + $0x88] sm:$0xff]
    %v35 = vld [vmem:[%s1 + $0x90] sm:$0xff]
    %v36 = vld [vmem:[%s1 + $0x98] sm:$0xff]
    %v37 = vld [vmem:[%s1 + $0xa0] sm:$0xff]
    %v38 = vld [vmem:[%s1 + $0xa8] sm:$0xff]
    %v39 = vld [vmem:[%s1 + $0xb0] sm:$0xff]
    %v40 = vld [vmem:[%s1 + $0xb8] sm:$0xff]
    %v41 = vld [vmem:[%s1 + $0xc0] sm:$0xff]
    %v42 = vld [vmem:[%s1 + $0xc8] sm:$0xff]
    %v43 = vld [vmem:[%s1 + $0xd0] sm:$0xff]
    %v44 = vld [vmem:[%s1 + $0xd8] sm:$0xff]
    %v45 = vld [vmem:[%s1 + $0xe0] sm:$0xff]
    %v46 = vld [vmem:[%s1 + $0xe8] sm:$0xff]
    %v47 = vld [vmem:[%s1 + $0xf0] sm:$0xff]
    %v48 = vld [vmem:[%s1 + $0xf8] sm:$0xff]
    %v49 = vld [vmem:[%s1 + $0x100] sm:$0xff]
    %v50 = vld [vmem:[%s1 + $0x108] sm:$0xff]
    %v51 = vld [vmem:[%s1 + $0x110] sm:$0xff]
    %v52 = vld [vmem:[%s1 + $0x118] sm:$0xff]
    %v53 = vld [vmem:[%s1 + $0x120] sm:$0xff]
    %v54 = vld [vmem:[%s1 + $0x128] sm:$0xff]
    %v55 = vld [vmem:[%s1 + $0x130] sm:$0xff]
    %v56 = vld [vmem:[%s1 + $0x138] sm:$0xff]
    %v57 = vld [vmem:[%s1 + $0x140] sm:$0xff]
    %v58 = vld [vmem:[%s1 + $0x148] sm:$0xff]
    %v59 = vld [vmem:[%s1 + $0x150] sm:$0xff]
    %v60 = vld [vmem:[%s1 + $0x158] sm:$0xff]
    %v61 = vld [vmem:[%s1 + $0x160] sm:$0xff]
    %v62 = vld [vmem:[%s1 + $0x168] sm:$0xff]
    %v63 = vld [vmem:[%s1 + $0x170] sm:$0xff]
    %v64 = vld [vmem:[%s1 + $0x178] sm:$0xff]
    %v65 = vld [vmem:[%s2] sm:$0x7]
    %v67 = vlaneseq
    %v68 = vshrl.u32 %v67, 7
    %v69 = vsub.s32 0, %v68
    %v70 = vrot.slane %v65, %v69
    %v71 = vlaneseq
    %v72 = vshrl.u32 %v71, 7
    %v73 = vsub.s32 1, %v72
    %v74 = vrot.slane %v65, %v73
    %v75 = vlaneseq
    %v76 = vshrl.u32 %v75, 7
    %v77 = vsub.s32 2, %v76
    %v78 = vrot.slane %v65, %v77
    %vm82 = vcmask 687104
    %v84 = vsel %vm82, %v16, 0
    %v87 = vsel %vm82, %v17, 0
    %v90 = vsel %vm82, %v18, 0
    %v93 = vsel %vm82, %v19, 0
    %v96 = vsel %vm82, %v20, 0
    %v99 = vsel %vm82, %v21, 0
    %v102 = vsel %vm82, %v22, 0
    %v105 = vsel %vm82, %v23, 0
    %v108 = vsel %vm82, %v24, 0
    %v111 = vsel %vm82, %v25, 0
    %v114 = vsel %vm82, %v26, 0
    %v117 = vsel %vm82, %v27, 0
    %v120 = vsel %vm82, %v28, 0
    %v123 = vsel %vm82, %v29, 0
    %v126 = vsel %vm82, %v30, 0
    %v129 = vsel %vm82, %v31, 0
    %v132 = vsel %vm82, %v32, 0
    %v135 = vsel %vm82, %v33, 0
    %v138 = vsel %vm82, %v34, 0
    %v141 = vsel %vm82, %v35, 0
    %v144 = vsel %vm82, %v36, 0
    %v147 = vsel %vm82, %v37, 0
    %v150 = vsel %vm82, %v38, 0
    %v153 = vsel %vm82, %v39, 0
    %v156 = vsel %vm82, %v40, 0
    %v159 = vsel %vm82, %v41, 0
    %v162 = vsel %vm82, %v42, 0
    %v165 = vsel %vm82, %v43, 0
    %v168 = vsel %vm82, %v44, 0
    %v171 = vsel %vm82, %v45, 0
    %v174 = vsel %vm82, %v46, 0
    %v177 = vsel %vm82, %v47, 0
    %v180 = vsel %vm82, %v48, 0
    %v183 = vsel %vm82, %v49, 0
    %v186 = vsel %vm82, %v50, 0
    %v189 = vsel %vm82, %v51, 0
    %v192 = vsel %vm82, %v52, 0
    %v195 = vsel %vm82, %v53, 0
    %v198 = vsel %vm82, %v54, 0
    %v201 = vsel %vm82, %v55, 0
    %v204 = vsel %vm82, %v56, 0
    %v207 = vsel %vm82, %v57, 0
    %v210 = vsel %vm82, %v58, 0
    %v213 = vsel %vm82, %v59, 0
    %v216 = vsel %vm82, %v60, 0
    %v219 = vsel %vm82, %v61, 0
    %v222 = vsel %vm82, %v62, 0
    %v225 = vsel %vm82, %v63, 0
    %v228 = vsel %vm82, %v64, 0
    %230 = vmatprep.subr.mxu0 0.0
    %231 = vmatpush1.xpose.msra.mxu0 %v132
    %232 = vmatprep.subr.mxu0 0.0
    %233 = vmatpush1.xpose.msra.mxu0 %v129
    %234 = vmatprep.subr.mxu0 0.0
    %235 = vmatpush1.xpose.msra.mxu0 %v126
    %236 = vmatprep.subr.mxu0 0.0
    %237 = vmatpush1.xpose.msra.mxu0 %v123
    %238 = vmatprep.subr.mxu0 0.0
    %239 = vmatpush1.xpose.msra.mxu0 %v120
    %240 = vmatprep.subr.mxu0 0.0
    %241 = vmatpush1.xpose.msra.mxu0 %v117
    %242 = vmatprep.subr.mxu0 0.0
    %243 = vmatpush1.xpose.msra.mxu0 %v114
    %244 = vmatprep.subr.mxu0 0.0
    %245 = vmatpush1.xpose.msra.mxu0 %v111
    %246 = vmatprep.subr.mxu0 0.0
    %247 = vmatpush1.xpose.msra.mxu0 %v108
    %248 = vmatprep.subr.mxu0 0.0
    %249 = vmatpush1.xpose.msra.mxu0 %v105
    %250 = vmatprep.subr.mxu0 0.0
    %251 = vmatpush1.xpose.msra.mxu0 %v102
    %252 = vmatprep.subr.mxu0 0.0
    %253 = vmatpush1.xpose.msra.mxu0 %v99
    %254 = vmatprep.subr.mxu0 0.0
    %255 = vmatpush1.xpose.msra.mxu0 %v96
    %256 = vmatprep.subr.mxu0 0.0
    %257 = vmatpush1.xpose.msra.mxu0 %v93
    %258 = vmatprep.subr.mxu0 0.0
    %259 = vmatpush1.xpose.msra.mxu0 %v90
    %260 = vmatprep.subr.mxu0 0.0
    %261 = vmatpush1.xpose.msra.mxu0 %v87
    %262 = vmatprep.subr.mxu0 0.0
    %263 = vmatpush2.xpose.msra.mxu0 %v180
    %264 = vmatprep.subr.mxu0 0.0
    %265 = vmatpush2.xpose.msra.mxu0 %v177
    %266 = vmatprep.subr.mxu0 0.0
    %267 = vmatpush2.xpose.msra.mxu0 %v174
    %268 = vmatprep.subr.mxu0 0.0
    %269 = vmatpush2.xpose.msra.mxu0 %v171
    %270 = vmatprep.subr.mxu0 0.0
    %271 = vmatpush2.xpose.msra.mxu0 %v168
    %272 = vmatprep.subr.mxu0 0.0
    %273 = vmatpush2.xpose.msra.mxu0 %v165
    %274 = vmatprep.subr.mxu0 0.0
    %275 = vmatpush2.xpose.msra.mxu0 %v162
    %276 = vmatprep.subr.mxu0 0.0
    %277 = vmatpush2.xpose.msra.mxu0 %v159
    %278 = vmatprep.subr.mxu0 0.0
    %279 = vmatpush2.xpose.msra.mxu0 %v156
    %280 = vmatprep.subr.mxu0 0.0
    %281 = vmatpush2.xpose.msra.mxu0 %v153
    %282 = vmatprep.subr.mxu0 0.0
    %283 = vmatpush2.xpose.msra.mxu0 %v150
    %284 = vmatprep.subr.mxu0 0.0
    %285 = vmatpush2.xpose.msra.mxu0 %v147
    %286 = vmatprep.subr.mxu0 0.0
    %287 = vmatpush2.xpose.msra.mxu0 %v144
    %288 = vmatprep.subr.mxu0 0.0
    %289 = vmatpush2.xpose.msra.mxu0 %v141
    %290 = vmatprep.subr.mxu0 0.0
    %291 = vmatpush2.xpose.msra.mxu0 %v138
    %292 = vmatprep.subr.mxu0 0.0
    %293 = vmatpush2.xpose.msra.mxu0 %v135
    %294 = vmatprep.mubr.f32.mxu0 0.0
    %295 = vmatmul.mubr.f32.gmra.mxu0 %v84
    %v296 = vpop.f32.mrf.mxu0
    %v297 = vadd.f32 %v70, %v296
    %v298 = vpop.f32.mrf.mxu0
    %v299 = vadd.f32 %v74, %v298
    %300 = vdwg.mxu0
    %301 = vmatprep.subr.mxu0 0.0
    %302 = vmatpush1.xpose.msra.mxu0 %v228
    %303 = vmatprep.subr.mxu0 0.0
    %304 = vmatpush1.xpose.msra.mxu0 %v225
    %305 = vmatprep.subr.mxu0 0.0
    %306 = vmatpush1.xpose.msra.mxu0 %v222
    %307 = vmatprep.subr.mxu0 0.0
    %308 = vmatpush1.xpose.msra.mxu0 %v219
    %309 = vmatprep.subr.mxu0 0.0
    %310 = vmatpush1.xpose.msra.mxu0 %v216
    %311 = vmatprep.subr.mxu0 0.0
    %312 = vmatpush1.xpose.msra.mxu0 %v213
    %313 = vmatprep.subr.mxu0 0.0
    %314 = vmatpush1.xpose.msra.mxu0 %v210
    %315 = vmatprep.subr.mxu0 0.0
    %316 = vmatpush1.xpose.msra.mxu0 %v207
    %317 = vmatprep.subr.mxu0 0.0
    %318 = vmatpush1.xpose.msra.mxu0 %v204
    %319 = vmatprep.subr.mxu0 0.0
    %320 = vmatpush1.xpose.msra.mxu0 %v201
    %321 = vmatprep.subr.mxu0 0.0
    %322 = vmatpush1.xpose.msra.mxu0 %v198
    %323 = vmatprep.subr.mxu0 0.0
    %324 = vmatpush1.xpose.msra.mxu0 %v195
    %325 = vmatprep.subr.mxu0 0.0
    %326 = vmatpush1.xpose.msra.mxu0 %v192
    %327 = vmatprep.subr.mxu0 0.0
    %328 = vmatpush1.xpose.msra.mxu0 %v189
    %329 = vmatprep.subr.mxu0 0.0
    %330 = vmatpush1.xpose.msra.mxu0 %v186
    %331 = vmatprep.subr.mxu0 0.0
    %332 = vmatpush1.xpose.msra.mxu0 %v183
    %333 = vmatprep.subr.mxu0 0.0
    %334 = vmatpush2.xpose.msra.mxu0 0.0
    %335 = vmatprep.subr.mxu0 0.0
    %336 = vmatpush2.xpose.msra.mxu0 0.0
    %337 = vmatprep.subr.mxu0 0.0
    %338 = vmatpush2.xpose.msra.mxu0 0.0
    %339 = vmatprep.subr.mxu0 0.0
    %340 = vmatpush2.xpose.msra.mxu0 0.0
    %341 = vmatprep.subr.mxu0 0.0
    %342 = vmatpush2.xpose.msra.mxu0 0.0
    %343 = vmatprep.subr.mxu0 0.0
    %344 = vmatpush2.xpose.msra.mxu0 0.0
    %345 = vmatprep.subr.mxu0 0.0
    %346 = vmatpush2.xpose.msra.mxu0 0.0
    %347 = vmatprep.subr.mxu0 0.0
    %348 = vmatpush2.xpose.msra.mxu0 0.0
    %349 = vmatprep.subr.mxu0 0.0
    %350 = vmatpush2.xpose.msra.mxu0 0.0
    %351 = vmatprep.subr.mxu0 0.0
    %352 = vmatpush2.xpose.msra.mxu0 0.0
    %353 = vmatprep.subr.mxu0 0.0
    %354 = vmatpush2.xpose.msra.mxu0 0.0
    %355 = vmatprep.subr.mxu0 0.0
    %356 = vmatpush2.xpose.msra.mxu0 0.0
    %357 = vmatprep.subr.mxu0 0.0
    %358 = vmatpush2.xpose.msra.mxu0 0.0
    %359 = vmatprep.subr.mxu0 0.0
    %360 = vmatpush2.xpose.msra.mxu0 0.0
    %361 = vmatprep.subr.mxu0 0.0
    %362 = vmatpush2.xpose.msra.mxu0 0.0
    %363 = vmatprep.subr.mxu0 0.0
    %364 = vmatpush2.xpose.msra.mxu0 0.0
    %365 = vmatprep.mubr.f32.mxu0 0.0
    %366 = vmatmul.mubr.f32.gmra.mxu0 %v84
    %v367 = vpop.f32.mrf.mxu0
    %v368 = vadd.f32 %v78, %v367
    %v369 = vpop.f32.mrf.mxu0
    %370 = vdwg.mxu0
    %v371 = vxor.u32 %v297, 2147483648
    %v372 = vxor.u32 %v299, 2147483648
    %v373 = vxor.u32 %v368, 2147483648
    %v374 = vmul.f32 %v371, 1.442695
    %v375 = vpow.pop %v374
    %v376 = vmul.f32 %v372, 1.442695
    %v377 = vpow.pop %v376
    %v378 = vmul.f32 %v373, 1.442695
    %v379 = vpow.pop %v378
    %v380 = vadd.f32 %v375, 1.0
    %v381 = vadd.f32 %v377, 1.0
    %v382 = vadd.f32 %v379, 1.0
    %v383 = vrcp.pop %v380
    %v384 = vmul.f32 1.0, %v383
    %v385 = vrcp.pop %v381
    %v386 = vmul.f32 1.0, %v385
    %v387 = vrcp.pop %v382
    %v388 = vmul.f32 1.0, %v387
    %v392 = vcombine.low %v384, %v386
    %v394 = vunpack.c.l.s4 1966171168
    %v395 = vunpack.c.0.s8 %v394
    %v396 = vlaneseq
    %v397 = vshrl.u32 %v396, 7
    %v398 = vsub.s32 %v395, %v397
    %v399 = vrot.slane %v392, %v398
    %v401 = vunpack.c.l.s4 1966171168
    %v402 = vunpack.c.0.s8 %v401
    %v403 = vlaneseq
    %v404 = vshrl.u32 %v403, 7
    %v405 = vsub.s32 %v402, %v404
    %v406 = vrot.slane %v388, %v405
    %v407 = vcombine.low %v399, %v406
    %v409 = vunpack.c.l.s4 1966171168
    %v410 = vunpack.c.0.s8 %v409
    %v411 = vlaneseq
    %v412 = vshrl.u32 %v411, 7
    %v413 = vsub.s32 %v410, %v412
    %v414 = vrot.slane %v407, %v413
    %v416 = vlaneseq
    %vm417 = vcmp.ge.s32.totalorder %v416, 0
    %vm418 = vcmp.lt.s32.totalorder %v416, 384
    %vm419 = vmand %vm417, %vm418
    %420 = vst.msk [vmem:[#allocation2] sm:$0x7] %vm419, %v414
    // Predicated region
    $region14: #{tpu_custom_call.1} parent=1 // pred_check
      _
    $region15: #{tpu_custom_call.1} parent=1 // pred_check_branch
      %422 = sbr.rel (0) target = $region17
    $region16: #{tpu_custom_call.1} parent=1 // pred_region
      %s424 = ssub.s32 48, 48
      %425 = vsyncadd [#allocation3], %s424
      %s427 = sshll.u32 [#allocation2], 4
      %s428 = int_to_ptr.vmem [resolvable:$true] %s427
      %430 = dma.vmem_to_hbm [thread:$0]  %s428, 48, %s3, [#allocation3]
    $region17: #{tpu_custom_call.1} parent=1 // pred_fallthru
      _
    // Predicated region
    $region18: #{tpu_custom_call.1} parent=1 // pred_check
      _
    $region19: #{tpu_custom_call.1} parent=1 // pred_check_branch
      %432 = sbr.rel (0) target = $region21
    $region20: #{tpu_custom_call.1} parent=1 // pred_region
      %433 = dma.done [#allocation3], 48
    $region21: #{tpu_custom_call.1} parent=1 // pred_fallthru
      _
    %434 = vsyncpa [#allocation3], 1

</llo_original>
